<compile_context>
chip_gen: v7x
topology: tpu7x:2x2x1
jax: 0.10.0
libtpu: 0.0.40
codegen_flags: <defaults>
</compile_context>

<pallas_src>
import math
import functools

import jax
import jax.numpy as jnp
import numpy as np
from jax.experimental import pallas as pl
from jax.experimental.pallas import tpu as pltpu


def _vid_embed_kernel(x_ref, w_ref, add_ref, out_ref):
    # x_ref:   (rows, K)  matmul_dtype   (rows = batch_tile * num_patch)
    # w_ref:   (K, L)     matmul_dtype   (resident, single-buffered)
    # add_ref: (rows, L)  f32            (resident fused  b + t@W + pos[1:],  tiled over the batch tile)
    # out_ref: (rows, L)  f32
    proj = jnp.dot(x_ref[...], w_ref[...], preferred_element_type=jnp.float32)
    out_ref[...] = (proj + add_ref[...]).astype(out_ref.dtype)


def _pick_batch_tile(batch, num_patch, target_rows=512, min_steps=2):
    """Batch tile so rows = bt*num_patch ~ target_rows, >= min_steps grid steps when possible,
    and rows a multiple of 8 (sublane-legal block) whenever the grid has > 1 step."""
    bt = max(1, target_rows // max(num_patch, 1))
    if batch >= min_steps:
        bt = min(bt, max(1, batch // min_steps))   # keep >= 2 steps (v7x megacore / pipelining)
    else:
        bt = 1
    cand = bt
    while cand > 1 and (cand * num_patch) % 8 != 0:
        cand -= 1
    if (cand * num_patch) % 8 == 0:
        return cand
    cand = bt                                       # grow instead (batch gets zero-padded)
    while (cand * num_patch) % 8 != 0:
        cand += 1
    return cand


def vid_input_embedding(x, params, *, patch_size, matmul_dtype=jnp.bfloat16,
                        batch_tile=None, target_rows=512):
    w, b, cls_tok, pos, temp = params
    p = patch_size

    # ---- bf16 cast BEFORE the rearrange (halves the XLA relayout pass), then patch rearrange ----
    x_c = x.astype(matmul_dtype)
    if x.ndim == 5:                                       # (B, F, H, W, C), n_channels == 3 path
        bsz, f, hh, ww, c = x.shape
        h, wg = hh // p, ww // p
        per_frame = p * p * c
        patches = x_c.reshape(bsz, f, h, p, wg, p, c)
        patches = patches.transpose(0, 2, 4, 1, 3, 5, 6).reshape(bsz, h * wg, f * per_frame)
    elif x.ndim == 4:                                     # (B, F, H, W) path
        bsz, f, hh, ww = x.shape
        h, wg = hh // p, ww // p
        per_frame = p * p
        patches = x_c.reshape(bsz, f, h, p, wg, p)
        patches = patches.transpose(0, 2, 4, 1, 3, 5).reshape(bsz, h * wg, f * per_frame)
    else:
        raise ValueError("expected 4-D (B,F,H,W) or 5-D (B,F,H,W,C) input")

    s = h * wg                                            # num_patch
    k = patches.shape[-1]                                 # input_size
    l = w.shape[1]                                        # latent_size

    # ---- fuse temp-embedding, bias and positional add into one resident additive term ----
    # Patch column j belongs to frame j // per_frame, so the temp add is a per-column vector t_col;
    # by linearity (x + t) @ W + b + pos == x @ W + (t @ W + b + pos).
    # TODO(synk): the original 5-D torch `expand` of the (1,F,1,1) temp_embedding is
    # shape-inconsistent; we implement the clearly intended per-frame broadcast.
    w_f32 = w.astype(jnp.float32)
    t_col = jnp.repeat(temp.astype(jnp.float32), per_frame).reshape(1, k)
    add_term = b.astype(jnp.float32) + t_col @ w_f32 + pos[1:, :].astype(jnp.float32)   # (s, l)
    cls_row = cls_tok.astype(jnp.float32) + pos[0:1, :].astype(jnp.float32)             # (1, l)

    # ---- M tiling: flatten to a (B_pad*S, K) row slab, fixed rows-per-step ----
    bt = batch_tile if batch_tile is not None else _pick_batch_tile(bsz, s, target_rows)
    bpad = pl.cdiv(bsz, bt) * bt
    if bpad != bsz:
        patches = jnp.concatenate(
            [patches, jnp.zeros((bpad - bsz, s, k), patches.dtype)], axis=0)
    rows = bt * s
    patches_flat = patches.reshape(bpad * s, k)
    w_cast = w.astype(matmul_dtype)
    add_tiled = jnp.tile(add_term, (bt, 1))               # (rows, l), resident

    # ---- explicit VMEM budget (single-buffered residents, 2-deep patch/out pipeline) ----
    itemsize = jnp.dtype(matmul_dtype).itemsize
    vmem_need = (2 * rows * k * itemsize      # patches tile, double-buffered
                 + k * l * itemsize           # weight, single-buffered
                 + rows * l * 4               # fused add term, single-buffered
                 + 2 * rows * l * 4)          # output tile, double-buffered
    vmem_limit = int(min(max(2 * vmem_need, 32 * 1024 * 1024), 48 * 1024 * 1024))

    proj = pl.pallas_call(
        _vid_embed_kernel,
        grid=(bpad // bt,),
        in_specs=[
            pl.BlockSpec((rows, k), lambda i: (i, 0)),                                   # patches
            pl.BlockSpec((k, l), lambda i: (0, 0), pipeline_mode=pl.Buffered(1)),        # weight
            pl.BlockSpec((rows, l), lambda i: (0, 0), pipeline_mode=pl.Buffered(1)),     # add term
        ],
        out_specs=pl.BlockSpec((rows, l), lambda i: (i, 0)),
        out_shape=jax.ShapeDtypeStruct((bpad * s, l), jnp.float32),
        compiler_params=pltpu.CompilerParams(
            dimension_semantics=("parallel",),
            vmem_limit_bytes=vmem_limit),
    )(patches_flat, w_cast, add_tiled)

    proj = proj[: bsz * s].reshape(bsz, s, l)
    cls_rows = jnp.broadcast_to(cls_row[None, :, :], (bsz, 1, l))    # batch-invariant (B,1,L) concat
    return jnp.concatenate([cls_rows, proj], axis=1)


def init_params(key, *, input_size, latent_size, num_patch, num_frames):
    ks = jax.random.split(key, 5)
    lim = 1.0 / math.sqrt(input_size)
    # nn.Linear weight stored pre-transposed for right-multiplication: (input_size, latent)
    w = jax.random.uniform(ks[0], (input_size, latent_size), jnp.float32, -lim, lim)
    b = jax.random.uniform(ks[1], (1, latent_size), jnp.float32, -lim, lim)
    cls_tok = jax.random.normal(ks[2], (1, latent_size), jnp.float32)     # class_token (1,1,L) squeezed
    pos = jax.random.normal(ks[3], (num_patch + 1, 1), jnp.float32)       # pos_embedding (1,S+1,1) squeezed
    temp = jax.random.normal(ks[4], (num_frames,), jnp.float32)           # temp_embedding (1,F,1,1) squeezed
    return (w, b, cls_tok, pos, temp)


def reference(x, params, *, patch_size):
    """Pure-JAX f32 reference mirroring the PyTorch forward."""
    w, b, cls_tok, pos, temp = params
    p = patch_size
    if x.ndim == 5:
        bsz, f, hh, ww, c = x.shape
        x = x + temp.reshape(1, f, 1, 1, 1)
        h, wg = hh // p, ww // p
        patches = x.reshape(bsz, f, h, p, wg, p, c)
        patches = patches.transpose(0, 2, 4, 1, 3, 5, 6).reshape(bsz, h * wg, -1)
    else:
        bsz, f, hh, ww = x.shape
        x = x + temp.reshape(1, f, 1, 1)
        h, wg = hh // p, ww // p
        patches = x.reshape(bsz, f, h, p, wg, p)
        patches = patches.transpose(0, 2, 4, 1, 3, 5).reshape(bsz, h * wg, -1)
    proj = patches @ w + b
    l = w.shape[1]
    cls_rows = jnp.broadcast_to(cls_tok[None, :, :], (bsz, 1, l))
    return jnp.concatenate([cls_rows, proj], axis=1) + pos[None, :, :]


if __name__ == "__main__":
    # Small config consistent with the module defaults, scaled down:
    # patch_size=4, num_frames=2, n_channels=3, image_size=16, latent_size=128, batch=2
    patch_size, num_frames, n_channels, image_size, latent_size = 4, 2, 3, 16, 128
    batch = 2
    num_patch = (image_size // patch_size) ** 2                       # 16 tokens per sample (+1 cls)
    input_size = num_frames * patch_size * patch_size * n_channels    # 96

    key = jax.random.PRNGKey(0)
    kx, kx2, kp = jax.random.split(key, 3)
    x = jax.random.normal(kx, (batch, num_frames, image_size, image_size, n_channels), jnp.float32)
    params = init_params(kp, input_size=input_size, latent_size=latent_size,
                         num_patch=num_patch, num_frames=num_frames)

    # --- main path: bf16 MXU matmul with f32 accumulation (default) ---
    fwd = jax.jit(functools.partial(vid_input_embedding, patch_size=patch_size))
    out = jax.block_until_ready(fwd(x, params))
    assert out.shape == (batch, num_patch + 1, latent_size)
    ref = reference(x, params, patch_size=patch_size)
    np.testing.assert_allclose(np.asarray(out), np.asarray(ref), rtol=2e-2, atol=2e-2)

    # --- tight-tolerance check of the fused algebra on the f32 path (4-D input, odd batch + padding) ---
    input_size_4d = num_frames * patch_size * patch_size              # 32 (n_channels != 3 path)
    params_4d = init_params(kp, input_size=input_size_4d, latent_size=latent_size,
                            num_patch=num_patch, num_frames=num_frames)
    x4 = jax.random.normal(kx2, (3, num_frames, image_size, image_size), jnp.float32)
    fwd32 = jax.jit(functools.partial(vid_input_embedding, patch_size=patch_size,
                                      matmul_dtype=jnp.float32, batch_tile=2))
    out4 = jax.block_until_ready(fwd32(x4, params_4d))
    ref4 = reference(x4, params_4d, patch_size=patch_size)
    np.testing.assert_allclose(np.asarray(out4), np.asarray(ref4), rtol=2e-3, atol=2e-3)

    print("KERNEL_OK")
</pallas_src>

<mosaic_0001>
module attributes {stable_mosaic.version = 11 : i64} {
  func.func @_vid_embed_kernel(%arg0: i32, %arg1: memref<16x96xbf16, #tpu.memory_space<vmem>>, %arg2: memref<96x128xbf16, #tpu.memory_space<vmem>>, %arg3: memref<16x128xf32, #tpu.memory_space<vmem>>, %arg4: memref<16x128xf32, #tpu.memory_space<vmem>>) attributes {dimension_semantics = [#tpu.dimension_semantics<parallel>], iteration_bounds = array<i64: 2>, scalar_prefetch = 0 : i64, scratch_operands = 0 : i64, tpu.core_type = #tpu.core_type<tc>, window_params = [{transform_indices = @transform_0, window_bounds = array<i64: 16, 96>}, {pipeline_mode = #tpu.pipeline_mode<synchronous>, transform_indices = @transform_1, window_bounds = array<i64: 96, 128>}, {pipeline_mode = #tpu.pipeline_mode<synchronous>, transform_indices = @transform_2, window_bounds = array<i64: 16, 128>}, {transform_indices = @transform_3, window_bounds = array<i64: 16, 128>}]} {
    %c0 = arith.constant 0 : index
    %c0_0 = arith.constant 0 : index
    %0 = vector.load %arg1[%c0, %c0_0] : memref<16x96xbf16, #tpu.memory_space<vmem>>, vector<16x96xbf16>
    %c0_1 = arith.constant 0 : index
    %c0_2 = arith.constant 0 : index
    %1 = vector.load %arg2[%c0_1, %c0_2] : memref<96x128xbf16, #tpu.memory_space<vmem>>, vector<96x128xbf16>
    %cst = arith.constant dense<0.000000e+00> : vector<16x128xf32>
    %2 = tpu.matmul %0, %1, %cst {dimension_numbers = #tpu.dot_dimension_numbers<[1], [0], [0], [1], [0, 0, 1, 1], [], []>} : vector<16x96xbf16>, vector<96x128xbf16>, vector<16x128xf32> -> vector<16x128xf32>
    %c0_3 = arith.constant 0 : index
    %c0_4 = arith.constant 0 : index
    %3 = vector.load %arg3[%c0_3, %c0_4] : memref<16x128xf32, #tpu.memory_space<vmem>>, vector<16x128xf32>
    %4 = arith.addf %2, %3 : vector<16x128xf32>
    %c0_5 = arith.constant 0 : index
    %c0_6 = arith.constant 0 : index
    %5 = vector.load %arg4[%c0_5, %c0_6] : memref<16x128xf32, #tpu.memory_space<vmem>>, vector<16x128xf32>
    tpu.vector_store %arg4[%c0_5, %c0_6], %4 {strides = array<i32>} : memref<16x128xf32, #tpu.memory_space<vmem>>, vector<16x128xf32>,
    return
  }
  func.func @transform_0(%arg0: i32) -> (i32, i32) {
    %c0_i32 = arith.constant 0 : i32
    %c0_i32_0 = arith.constant 0 : i32
    return %arg0, %c0_i32 : i32, i32
  }
  func.func @transform_1(%arg0: i32) -> (i32, i32) {
    %c0_i32 = arith.constant 0 : i32
    %c0_i32_0 = arith.constant 0 : i32
    %c0_i32_1 = arith.constant 0 : i32
    return %c0_i32, %c0_i32_0 : i32, i32
  }
  func.func @transform_2(%arg0: i32) -> (i32, i32) {
    %c0_i32 = arith.constant 0 : i32
    %c0_i32_0 = arith.constant 0 : i32
    %c0_i32_1 = arith.constant 0 : i32
    return %c0_i32, %c0_i32_0 : i32, i32
  }
  func.func @transform_3(%arg0: i32) -> (i32, i32) {
    %c0_i32 = arith.constant 0 : i32
    %c0_i32_0 = arith.constant 0 : i32
    return %arg0, %c0_i32 : i32, i32
  }
}

</mosaic_0001>

<llo_original>
// kernel: vid_input_embedding.1
$region0: #{vid_input_embedding.1}
  #allocation0 [shape = 'u32[]', space=smem, size = 0x4, offset = 0x4, fixed_abs, tag = 'smem constant byte address 0x4 - core index']
  #allocation1 [shape = 'u32[144,128]{1,0:T(1,128)}', space=vmem, size = 0x12000, scoped, tag = 'internal scratch']
  %s0 = inlined_call_operand.vmem [shape: bf16[32,96], index: 0, kind: input, shape index: {}]
  %s1 = inlined_call_operand.vmem [shape: bf16[96,128], index: 1, kind: input, shape index: {}]
  %s2 = inlined_call_operand.vmem [shape: f32[16,128], index: 2, kind: input, shape index: {}]
  %s3 = inlined_call_operand.vmem [shape: f32[32,128], index: 3, kind: output, shape index: {}]
  %s4 = sld [smem:[#allocation0]]
  $region45: #{vid_input_embedding.1} parent=0
    _
  %s6 = ssub.s32 1, %s4
  %s7 = scalar_select 0, %s6, %s4
  loop: start=0, step=1, limit=4
  $region2: #{vid_input_embedding.1} parent=0 // loop_pre_header
    _
  $region3: #{vid_input_embedding.1} parent=0 // loop_header
    %s9 = sphi 0, %s13
    %p10 = scmp.ge.s32.totalorder %s9, 4
    %s19 = sphi 0, %s21
    %s22 = sphi 0, %s19
    %s23 = sphi 0, %s22
    %s39 = sphi 0, %s23
    %s43 = sphi 0, %s43
    %s45 = sphi 0, %s43
    %s46 = sphi 0, %s45
    %s60 = sphi 0, %s46
    %s64 = sphi 0, %s64
    %s66 = sphi 0, %s64
    %s67 = sphi 0, %s66
    %s81 = sphi 0, %s67
    %s87 = sphi 0, %s89
    %s90 = sphi 0, %s87
    %s91 = sphi 0, %s90
    %s107 = sphi 0, %s91
  $region4: #{vid_input_embedding.1} parent=0 // loop_header_branch
    %12 = sbr.rel (%p10) target = $region8
  $region5: #{vid_input_embedding.1} parent=0 // loop_body
    %s14 = ssub.s32 %s9, 1
    %s15 = ssub.s32 %s9, 2
    %s16 = sadd.s32 %s9, 1
    %s17 = ssub.s32 %s9, %s16
    %p18 = scmp.eq.s32.totalorder %s17, 0
    %s20 = sadd.s32 %s19, 1
    %s21 = scalar_select %p18, %s19, %s20
    %p24 = pneg %p18
    %p25 = scmp.eq.s32.totalorder %s9, 1
    %p26 = por %p24, %p25
    %p27 = scmp.ne.s32.totalorder %s19, %s22
    %p28 = scmp.eq.s32.totalorder %s9, 0
    %p29 = por %p27, %p28
    %p30 = scmp.ne.s32.totalorder %s19, %s22
    %p31 = scmp.eq.s32.totalorder %s14, 1
    %p32 = por %p30, %p31
    %p33 = scmp.ne.s32.totalorder %s22, %s23
    %p34 = scmp.eq.s32.totalorder %s14, 0
    %p35 = por %p33, %p34
    %p36 = scmp.ne.s32.totalorder %s22, %s23
    %p37 = scmp.eq.s32.totalorder %s15, 1
    %p38 = por %p36, %p37
    %p40 = scmp.ne.s32.totalorder %s23, %s39
    %p41 = scmp.eq.s32.totalorder %s15, 0
    %p42 = por %p40, %p41
    %s44 = sadd.s32 %s43, 1
    %p47 = scmp.eq.s32.totalorder %s9, 1
    %p48 = scmp.ne.s32.totalorder %s43, %s45
    %p49 = scmp.eq.s32.totalorder %s9, 0
    %p50 = por %p48, %p49
    %p51 = scmp.ne.s32.totalorder %s43, %s45
    %p52 = scmp.eq.s32.totalorder %s14, 1
    %p53 = por %p51, %p52
    %p54 = scmp.ne.s32.totalorder %s45, %s46
    %p55 = scmp.eq.s32.totalorder %s14, 0
    %p56 = por %p54, %p55
    %p57 = scmp.ne.s32.totalorder %s45, %s46
    %p58 = scmp.eq.s32.totalorder %s15, 1
    %p59 = por %p57, %p58
    %p61 = scmp.ne.s32.totalorder %s46, %s60
    %p62 = scmp.eq.s32.totalorder %s15, 0
    %p63 = por %p61, %p62
    %s65 = sadd.s32 %s64, 1
    %p68 = scmp.eq.s32.totalorder %s9, 1
    %p69 = scmp.ne.s32.totalorder %s64, %s66
    %p70 = scmp.eq.s32.totalorder %s9, 0
    %p71 = por %p69, %p70
    %p72 = scmp.ne.s32.totalorder %s64, %s66
    %p73 = scmp.eq.s32.totalorder %s14, 1
    %p74 = por %p72, %p73
    %p75 = scmp.ne.s32.totalorder %s66, %s67
    %p76 = scmp.eq.s32.totalorder %s14, 0
    %p77 = por %p75, %p76
    %p78 = scmp.ne.s32.totalorder %s66, %s67
    %p79 = scmp.eq.s32.totalorder %s15, 1
    %p80 = por %p78, %p79
    %p82 = scmp.ne.s32.totalorder %s67, %s81
    %p83 = scmp.eq.s32.totalorder %s15, 0
    %p84 = por %p82, %p83
    %s85 = ssub.s32 %s9, %s16
    %p86 = scmp.eq.s32.totalorder %s85, 0
    %s88 = sadd.s32 %s87, 1
    %s89 = scalar_select %p86, %s87, %s88
    %p92 = pneg %p86
    %p93 = scmp.eq.s32.totalorder %s9, 1
    %p94 = por %p92, %p93
    %p95 = scmp.ne.s32.totalorder %s87, %s90
    %p96 = scmp.eq.s32.totalorder %s9, 0
    %p97 = por %p95, %p96
    %p98 = scmp.ne.s32.totalorder %s87, %s90
    %p99 = scmp.eq.s32.totalorder %s14, 1
    %p100 = por %p98, %p99
    %p101 = scmp.ne.s32.totalorder %s90, %s91
    %p102 = scmp.eq.s32.totalorder %s14, 0
    %p103 = por %p101, %p102
    %p104 = scmp.ne.s32.totalorder %s90, %s91
    %p105 = scmp.eq.s32.totalorder %s15, 1
    %p106 = por %p104, %p105
    %p108 = scmp.ne.s32.totalorder %s91, %s107
    %p109 = scmp.eq.s32.totalorder %s15, 0
    %p110 = por %p108, %p109
    %p111 = scmp.le.s32.totalorder 1, %s9
    %p112 = scmp.lt.s32.totalorder %s9, 3
    %p113 = pnand %p111, %p112
    %p114 = pneg %p113
    // Predicated region
    $region9: #{vid_input_embedding.1} parent=5 // pred_check
      _
    $region10: #{vid_input_embedding.1} parent=5 // pred_check_branch
      %116 = sbr.rel (%p113) target = $region12
    $region11: #{vid_input_embedding.1} parent=5 // pred_region
      %s117 = ssub.s32 %s9, 1
      // Predicated region
      $region13: #{vid_input_embedding.1} parent=11 // pred_check
        %p118 = pneg %p56
      $region14: #{vid_input_embedding.1} parent=11 // pred_check_branch
        %120 = sbr.rel (%p118) target = $region16
      $region15: #{vid_input_embedding.1} parent=11 // pred_region
        _
      $region16: #{vid_input_embedding.1} parent=11 // pred_fallthru
        _
      // Predicated region
      $region17: #{vid_input_embedding.1} parent=11 // pred_check
        %p121 = pneg %p77
      $region18: #{vid_input_embedding.1} parent=11 // pred_check_branch
        %123 = sbr.rel (%p121) target = $region20
      $region19: #{vid_input_embedding.1} parent=11 // pred_region
        _
      $region20: #{vid_input_embedding.1} parent=11 // pred_fallthru
        _
    $region12: #{vid_input_embedding.1} parent=5 // pred_fallthru
      _
    %p124 = scmp.lt.s32.totalorder %s9, 2
    // Predicated region
    $region21: #{vid_input_embedding.1} parent=5 // pred_check
      %p125 = pneg %p124
    $region22: #{vid_input_embedding.1} parent=5 // pred_check_branch
      %127 = sbr.rel (%p125) target = $region24
    $region23: #{vid_input_embedding.1} parent=5 // pred_region
      // Predicated region
      $region25: #{vid_input_embedding.1} parent=23 // pred_check
        %p128 = pneg %p29
      $region26: #{vid_input_embedding.1} parent=23 // pred_check_branch
        %130 = sbr.rel (%p128) target = $region28
      $region27: #{vid_input_embedding.1} parent=23 // pred_region
        %s131 = smul.u32 2, %s9
        %p132 = scmp.lt.s32.totalorder %s131, 3
        %s133 = scalar_select %p132, %s131, 3
        %s134 = smul.addr %s133, 4
        %s135 = scalar_lea.vmem %s0, %s134
        %s136 = smul.u32 2, %s9
      $region28: #{vid_input_embedding.1} parent=23 // pred_fallthru
        _
    $region24: #{vid_input_embedding.1} parent=5 // pred_fallthru
      _
    %p137 = scmp.le.s32.totalorder 1, %s9
    %p138 = scmp.lt.s32.totalorder %s9, 3
    %p139 = pnand %p137, %p138
    %p140 = pneg %p139
    // Predicated region
    $region29: #{vid_input_embedding.1} parent=5 // pred_check
      _
    $region30: #{vid_input_embedding.1} parent=5 // pred_check_branch
      %142 = sbr.rel (%p139) target = $region32
    $region31: #{vid_input_embedding.1} parent=5 // pred_region
      %s143 = ssub.s32 %s9, 1
      %s144 = smul.u32 2, %s14
      %p145 = scmp.lt.s32.totalorder %s144, 3
      %s146 = scalar_select %p145, %s144, 3
      %s147 = smul.addr %s146, 4
      %s148 = scalar_lea.vmem %s0, %s147
      %p149 = pneg %p35
      %p150 = pneg %p32
      %p151 = pneg %p56
      %p152 = pneg %p53
      %p153 = pneg %p77
      %p154 = pneg %p74
      %p155 = pneg %p103
      %p156 = pneg %p100
      %s157 = smul.u32 2, %s14
      %p158 = scmp.lt.s32.totalorder %s157, 3
      %s159 = scalar_select %p158, %s157, 3
      %s160 = smul.addr %s159, 8
      %s161 = scalar_lea.vmem %s3, %s160
      %s162 = smul.u32 2, %s14
      %p163 = scmp.lt.s32.totalorder %s162, 3
      %s164 = scalar_select %p163, %s162, 3
      %s165 = smul.addr %s164, 4
      %s166 = scalar_lea.vmem %s0, %s165
      %s167 = smul.u32 2, %s14
      %s168 = smul.u32 2, %s14
      %p169 = scmp.lt.s32.totalorder %s168, 3
      %s170 = scalar_select %p169, %s168, 3
      %s171 = smul.addr %s170, 8
      %s172 = scalar_lea.vmem %s3, %s171
      %s173 = smul.u32 2, %s14
      %v175 = vld [vmem:[%s166] sm:$0xf]
      %v176 = vld [vmem:[%s166 + $0x4] sm:$0xf]
      %v177 = vld [vmem:[%s1] sm:$0xf]
      %v178 = vld [vmem:[%s1 + $0x4] sm:$0xf]
      %v179 = vld [vmem:[%s1 + $0x8] sm:$0xf]
      %v180 = vld [vmem:[%s1 + $0xc] sm:$0xf]
      %v181 = vld [vmem:[%s1 + $0x10] sm:$0xf]
      %v182 = vld [vmem:[%s1 + $0x14] sm:$0xf]
      %v183 = vld [vmem:[%s1 + $0x18] sm:$0xf]
      %v184 = vld [vmem:[%s1 + $0x1c] sm:$0xf]
      %v185 = vld [vmem:[%s1 + $0x20] sm:$0xf]
      %v186 = vld [vmem:[%s1 + $0x24] sm:$0xf]
      %v187 = vld [vmem:[%s1 + $0x28] sm:$0xf]
      %v188 = vld [vmem:[%s1 + $0x2c] sm:$0xf]
      %v189 = vld [vmem:[%s2] sm:$0xff]
      %v190 = vld [vmem:[%s2 + $0x8] sm:$0xff]
      %v193 = vunpack.c.l.b16 %v175
      %v194 = vunpack.c.l.b16 %v176
      %v195 = vpack.c.b16 %v194, %v193
      %v208 = vunpack.c.l.b16 %v177
      %v209 = vunpack.c.l.b16 %v178
      %v210 = vunpack.c.l.b16 %v179
      %v211 = vunpack.c.l.b16 %v180
      %v212 = vunpack.c.l.b16 %v181
      %v213 = vunpack.c.l.b16 %v182
      %v214 = vunpack.c.l.b16 %v183
      %v215 = vunpack.c.l.b16 %v184
      %v216 = vunpack.c.l.b16 %v185
      %v217 = vunpack.c.l.b16 %v186
      %v218 = vunpack.c.l.b16 %v187
      %v219 = vunpack.c.l.b16 %v188
      %v220 = vpack.c.b16 %v209, %v208
      %v221 = vpack.c.b16 %v211, %v210
      %v222 = vpack.c.b16 %v213, %v212
      %v223 = vpack.c.b16 %v215, %v214
      %v224 = vpack.c.b16 %v217, %v216
      %v225 = vpack.c.b16 %v219, %v218
      %vm232 = vcmask 785408
      %v234 = vsel %vm232, %v195, 0
      %236 = vmatprep.subr.bf16.mxu0 0
      %237 = vmatpush1.bf16.msra.mxu0 %v220
      %238 = vmatprep.subr.bf16.mxu0 0
      %239 = vmatpush1.bf16.msra.mxu0 %v221
      %240 = vmatprep.subr.bf16.mxu0 0
      %241 = vmatpush1.bf16.msra.mxu0 %v222
      %242 = vmatprep.subr.bf16.mxu0 0
      %243 = vmatpush1.bf16.msra.mxu0 %v223
      %244 = vmatprep.subr.bf16.mxu0 0
      %245 = vmatpush1.bf16.msra.mxu0 %v224
      %246 = vmatprep.subr.bf16.mxu0 0
      %247 = vmatpush1.bf16.msra.mxu0 %v225
      %248 = vmatprep.subr.bf16.mxu0 0
      %249 = vmatpush1.bf16.msra.mxu0 0
      %250 = vmatprep.subr.bf16.mxu0 0
      %251 = vmatpush1.bf16.msra.mxu0 0
      %252 = vmatprep.subr.bf16.mxu0 0
      %253 = vmatpush1.bf16.msra.mxu0 0
      %254 = vmatprep.subr.bf16.mxu0 0
      %255 = vmatpush1.bf16.msra.mxu0 0
      %256 = vmatprep.subr.bf16.mxu0 0
      %257 = vmatpush1.bf16.msra.mxu0 0
      %258 = vmatprep.subr.bf16.mxu0 0
      %259 = vmatpush1.bf16.msra.mxu0 0
      %260 = vmatprep.subr.bf16.mxu0 0
      %261 = vmatpush1.bf16.msra.mxu0 0
      %262 = vmatprep.subr.bf16.mxu0 0
      %263 = vmatpush1.bf16.msra.mxu0 0
      %264 = vmatprep.subr.bf16.mxu0 0
      %265 = vmatpush1.bf16.msra.mxu0 0
      %266 = vmatprep.subr.bf16.mxu0 0
      %267 = vmatpush1.bf16.msra.mxu0 0
      %268 = vmatprep.mubr.bf16.mxu0 0
      %269 = vmatmul.mubr.bf16.gmra.mrb[0].mxu0 %v234
      %v270 = vpop.f32.mrb[0].mxu0
      %v271 = vadd.f32 %v189, %v270
      %v272 = vpop.f32.mrb[0].mxu0
      %v273 = vpop.f32.mrb[0].mxu0
      %v274 = vadd.f32 %v190, %v273
      %v275 = vpop.f32.mrb[0].mxu0
      %276 = vdwg.mxu0
      %277 = vst [vmem:[%s172] sm:$0xff] %v271
      %278 = vst [vmem:[%s172 + $0x8] sm:$0xff] %v274
      %s279 = smul.u32 2, %s14
      %p280 = scmp.lt.s32.totalorder %s279, 3
      %s281 = scalar_select %p280, %s279, 3
      %s282 = smul.addr %s281, 8
      %s283 = scalar_lea.vmem %s3, %s282
      // Predicated region
      $region33: #{vid_input_embedding.1} parent=31 // pred_check
        %p284 = pneg %p100
      $region34: #{vid_input_embedding.1} parent=31 // pred_check_branch
        %286 = sbr.rel (%p284) target = $region36
      $region35: #{vid_input_embedding.1} parent=31 // pred_region
        %s287 = smul.u32 2, %s14
      $region36: #{vid_input_embedding.1} parent=31 // pred_fallthru
        _
    $region32: #{vid_input_embedding.1} parent=5 // pred_fallthru
      _
    %p288 = scmp.le.s32.totalorder 2, %s9
    // Predicated region
    $region37: #{vid_input_embedding.1} parent=5 // pred_check
      %p289 = pneg %p288
    $region38: #{vid_input_embedding.1} parent=5 // pred_check_branch
      %291 = sbr.rel (%p289) target = $region40
    $region39: #{vid_input_embedding.1} parent=5 // pred_region
      %s292 = ssub.s32 %s9, 2
      // Predicated region
      $region41: #{vid_input_embedding.1} parent=39 // pred_check
        %p293 = pneg %p106
      $region42: #{vid_input_embedding.1} parent=39 // pred_check_branch
        %295 = sbr.rel (%p293) target = $region44
      $region43: #{vid_input_embedding.1} parent=39 // pred_region
        %s296 = smul.u32 2, %s15
        %p297 = scmp.lt.s32.totalorder %s296, 3
        %s298 = scalar_select %p297, %s296, 3
        %s299 = smul.addr %s298, 8
        %s300 = scalar_lea.vmem %s3, %s299
      $region44: #{vid_input_embedding.1} parent=39 // pred_fallthru
        _
    $region40: #{vid_input_embedding.1} parent=5 // pred_fallthru
      _
  $region6: #{vid_input_embedding.1} parent=0 // loop_footer
    %s13 = sadd.s32 1, %s9
  $region7: #{vid_input_embedding.1} parent=0 // loop_footer_branch
    %8 = sbr.rel target = $region3
  $region8: #{vid_input_embedding.1} parent=0 // loop_exit
    _

</llo_original>
